<compile_context>
chip_gen: v7x
topology: tpu7x:2x2x1
jax: 0.10.0
libtpu: 0.0.40
codegen_flags: <defaults>
</compile_context>

<pallas_src>
import math

import jax
import jax.numpy as jnp
from jax.experimental import pallas as pl
from jax.experimental.pallas import tpu as pltpu


# ----------------------------------------------------------------------------
# Kernels
# ----------------------------------------------------------------------------
def _split_linear_kernel(x_ref, w_ref, b_ref, o_ref):
    """Single-K path: full reduction in one dot per split branch.

    Block shapes:
      x_ref: (2, TB, IN)    w_ref: (2, IN, TN)
      b_ref: (2, 1, TN)     o_ref: (2, TB, TN)
    The split axis (size 2) is unrolled into two independent MXU chains the
    scheduler can interleave.
    """
    y0 = jnp.dot(x_ref[0], w_ref[0], preferred_element_type=jnp.float32) + b_ref[0]
    y1 = jnp.dot(x_ref[1], w_ref[1], preferred_element_type=jnp.float32) + b_ref[1]
    o_ref[0] = y0.astype(o_ref.dtype)
    o_ref[1] = y1.astype(o_ref.dtype)


def _split_linear_kernel_ktiled(x_ref, w_ref, b_ref, o_ref, acc_ref):
    """K-tiled path: innermost grid axis reduces IN into an f32 accumulator.

    Block shapes:
      x_ref: (2, TB, TK)    w_ref: (2, TK, TN)
      b_ref: (2, 1, TN)     o_ref/acc_ref: (2, TB, TN)
    """
    k = pl.program_id(2)

    @pl.when(k == 0)
    def _():
        acc_ref[...] = jnp.zeros_like(acc_ref)

    acc_ref[0] = acc_ref[0] + jnp.dot(
        x_ref[0], w_ref[0], preferred_element_type=jnp.float32)
    acc_ref[1] = acc_ref[1] + jnp.dot(
        x_ref[1], w_ref[1], preferred_element_type=jnp.float32)

    @pl.when(k == pl.num_programs(2) - 1)
    def _():
        o_ref[...] = (acc_ref[...] + b_ref[...].astype(jnp.float32)).astype(o_ref.dtype)


# ----------------------------------------------------------------------------
# Tiling / VMEM helpers
# ----------------------------------------------------------------------------
def _vmem_budget_bytes():
    """Per-generation VMEM budget: 85% of capacity, >=8 MiB headroom."""
    try:
        cap = int(pltpu.get_tpu_info().vmem_capacity_bytes)
    except Exception:
        cap = 64 * 1024 * 1024  # conservative (v7x per-TensorCore)
    return max(min(int(0.85 * cap), cap - 8 * 1024 * 1024), 16 * 1024 * 1024)


def _pick_tiles(B, IN, OUT_P, x_item, w_item, b_item, o_item, budget):
    """Pick (block_b, tn, tk) — largest tiles whose per-step footprint fits."""
    # Batch tile: prefer >=2 grid steps (shards across v7x's two TensorCores).
    prefs_b = (1024, 512, 256, 128, 64, 32, 16, 8)
    cand_b = [c for c in prefs_b if B % c == 0 and (B // c >= 2 or B < 16)]
    if not cand_b:
        cand_b = [c for c in prefs_b if B % c == 0] or [B]

    # Output tile (OUT_P is always a multiple of 128 after padding).
    cand_n = sorted(
        {c for c in (1024, 512, 256, 128) if OUT_P % c == 0}
        | ({OUT_P} if OUT_P <= 1024 else set()),
        reverse=True)

    # Reduction tile: full IN unless IN is large and 128-divisible.
    k_divs = [c for c in (2048, 1024, 512, 256, 128) if IN % c == 0 and c < IN]
    cand_k = ([IN] if (IN <= 2048 or not k_divs) else []) + k_divs
    if not cand_k:
        cand_k = [IN]

    def footprint(bb, tn, tk):
        # Double-buffered pipeline tiles (actual dtypes) + f32 accumulator.
        two_buf = 2 * (2 * bb * tk * x_item       # x tile
                       + 2 * tk * tn * w_item     # weight tile
                       + 2 * tn * b_item          # bias tile
                       + 2 * bb * tn * o_item)    # output tile
        acc = (2 * bb * tn * 4) if tk < IN else 0
        return two_buf + acc

    for bb in cand_b:
        for tn in cand_n:
            for tk in cand_k:
                if footprint(bb, tn, tk) <= budget:
                    return bb, tn, tk, footprint(bb, tn, tk)
    bb, tn, tk = cand_b[-1], cand_n[-1], cand_k[-1]
    return bb, tn, tk, footprint(bb, tn, tk)


# ----------------------------------------------------------------------------
# Wrapper
# ----------------------------------------------------------------------------
def split_balanced_linear(x, weights, bias, *, compute_dtype=None,
                          block_b=None, block_n=None, block_k=None):
    """splitBalancedLinear forward: einsum('ijk,ikl->ijl', x, weights) + bias."""
    s, B, IN = x.shape
    OUT = weights.shape[-1]
    assert s == 2
    assert weights.shape == (2, IN, OUT)
    assert bias.shape == (2, 1, OUT)

    out_dtype = x.dtype
    if compute_dtype is not None:
        # bf16 MXU inputs, f32 accumulation; bias & output keep caller dtypes.
        x = x.astype(compute_dtype)
        weights = weights.astype(compute_dtype)

    # Lane-dense output: pad OUT up to a multiple of 128 (zero weight/bias
    # columns -> the padded output columns are exact zeros, sliced off below).
    OUT_P = max(128, ((OUT + 127) // 128) * 128)
    if OUT_P != OUT:
        pad = OUT_P - OUT
        weights = jnp.pad(weights, ((0, 0), (0, 0), (0, pad)))
        bias = jnp.pad(bias, ((0, 0), (0, 0), (0, pad)))

    budget = _vmem_budget_bytes()
    x_item = jnp.dtype(x.dtype).itemsize
    w_item = jnp.dtype(weights.dtype).itemsize
    b_item = jnp.dtype(bias.dtype).itemsize
    o_item = jnp.dtype(out_dtype).itemsize

    bb, tn, tk, _ = _pick_tiles(B, IN, OUT_P, x_item, w_item, b_item, o_item, budget)
    if block_b is not None:
        bb = block_b
    if block_n is not None:
        tn = block_n
    if block_k is not None:
        tk = block_k
    assert B % bb == 0 and OUT_P % tn == 0 and IN % tk == 0

    num_n, num_b, num_k = OUT_P // tn, B // bb, IN // tk

    per_step = (2 * (2 * bb * tk * x_item + 2 * tk * tn * w_item
                     + 2 * tn * b_item + 2 * bb * tn * o_item)
                + ((2 * bb * tn * 4) if num_k > 1 else 0))
    vmem_limit = int(min(max(int(1.5 * per_step), 8 * 1024 * 1024), budget))

    if num_k == 1:
        # Grid (n, b): weight/bias block index changes only on the outer axis.
        grid = (num_n, num_b)
        in_specs = [
            pl.BlockSpec((2, bb, IN), lambda n, b: (0, b, 0)),
            pl.BlockSpec((2, IN, tn), lambda n, b: (0, 0, n)),
            pl.BlockSpec((2, 1, tn), lambda n, b: (0, 0, n)),
        ]
        out_spec = pl.BlockSpec((2, bb, tn), lambda n, b: (0, b, n))
        kernel = _split_linear_kernel
        scratch = []
        semantics = ("parallel", "parallel")
    else:
        # Grid (n, b, k): K innermost, "arbitrary", resident f32 accumulator.
        grid = (num_n, num_b, num_k)
        in_specs = [
            pl.BlockSpec((2, bb, tk), lambda n, b, k: (0, b, k)),
            pl.BlockSpec((2, tk, tn), lambda n, b, k: (0, k, n)),
            pl.BlockSpec((2, 1, tn), lambda n, b, k: (0, 0, n)),
        ]
        out_spec = pl.BlockSpec((2, bb, tn), lambda n, b, k: (0, b, n))
        kernel = _split_linear_kernel_ktiled
        scratch = [pltpu.VMEM((2, bb, tn), jnp.float32)]
        semantics = ("parallel", "parallel", "arbitrary")

    out_padded = pl.pallas_call(
        kernel,
        out_shape=jax.ShapeDtypeStruct((2, B, OUT_P), out_dtype),
        grid_spec=pltpu.PrefetchScalarGridSpec(
            num_scalar_prefetch=0,
            grid=grid,
            in_specs=in_specs,
            out_specs=out_spec,
            scratch_shapes=scratch,
        ),
        compiler_params=pltpu.CompilerParams(
            dimension_semantics=semantics,
            vmem_limit_bytes=vmem_limit,
        ),
    )(x, weights, bias)

    return out_padded[..., :OUT] if OUT_P != OUT else out_padded


# ----------------------------------------------------------------------------
# Init / reference (mirror the PyTorch module)
# ----------------------------------------------------------------------------
def init_split_balanced_linear(key, input_size, output_size):
    """kaiming_uniform_(a=sqrt(5)) on a (2, in, out) weight (fan_in = in*out),
    uniform(+-1/sqrt(fan_in)) on a (2, 1, out) bias."""
    kw, kb = jax.random.split(key)
    fan_in = input_size * output_size
    gain = math.sqrt(2.0 / (1.0 + 5.0))
    w_bound = gain * math.sqrt(3.0 / fan_in)
    b_bound = 1.0 / math.sqrt(fan_in)
    w = jax.random.uniform(kw, (2, input_size, output_size),
                           minval=-w_bound, maxval=w_bound, dtype=jnp.float32)
    b = jax.random.uniform(kb, (2, 1, output_size),
                           minval=-b_bound, maxval=b_bound, dtype=jnp.float32)
    return w, b


def split_balanced_linear_reference(x, weights, bias):
    """Pure-JAX reference of the PyTorch forward pass."""
    return jnp.einsum('ijk,ikl->ijl', x, weights) + bias


if __name__ == "__main__":
    # Small shapes: batch=16, input_size=32, output_size=16.
    B, input_size, output_size = 16, 32, 16

    key = jax.random.PRNGKey(0)
    kx, kp = jax.random.split(key)

    x = jax.random.normal(kx, (2, B, input_size), dtype=jnp.float32)
    w, b = init_split_balanced_linear(kp, input_size, output_size)

    ref = split_balanced_linear_reference(x, w, b)

    # f32 path (module-exact numerics).
    out = jax.block_until_ready(split_balanced_linear(x, w, b))
    assert out.shape == (2, B, output_size)
    assert jnp.allclose(out, ref, atol=1e-5, rtol=1e-5), "f32 mismatch vs reference"

    # bf16 MXU-input path (f32 accumulation) — loose tolerance.
    out_bf16 = jax.block_until_ready(
        split_balanced_linear(x, w, b, compute_dtype=jnp.bfloat16))
    assert out_bf16.shape == (2, B, output_size)
    assert jnp.allclose(out_bf16, ref, atol=1e-1, rtol=1e-1), "bf16 mismatch vs reference"

    print("KERNEL_OK")
</pallas_src>

<mosaic_0001>
module attributes {stable_mosaic.version = 11 : i64} {
  func.func @_split_linear_kernel(%arg0: i32, %arg1: i32, %arg2: memref<2x8x32xf32, #tpu.memory_space<vmem>>, %arg3: memref<2x32x128xf32, #tpu.memory_space<vmem>>, %arg4: memref<2x1x128xf32, #tpu.memory_space<vmem>>, %arg5: memref<2x8x128xf32, #tpu.memory_space<vmem>>) attributes {dimension_semantics = [#tpu.dimension_semantics<parallel>, #tpu.dimension_semantics<parallel>], iteration_bounds = array<i64: 1, 2>, scalar_prefetch = 0 : i64, scratch_operands = 0 : i64, tpu.core_type = #tpu.core_type<tc>, window_params = [{transform_indices = @transform_0, window_bounds = array<i64: 2, 8, 32>}, {transform_indices = @transform_1, window_bounds = array<i64: 2, 32, 128>}, {transform_indices = @transform_2, window_bounds = array<i64: 2, 1, 128>}, {transform_indices = @transform_3, window_bounds = array<i64: 2, 8, 128>}]} {
    %c0 = arith.constant 0 : index
    %c0_0 = arith.constant 0 : index
    %c0_1 = arith.constant 0 : index
    %0 = vector.load %arg2[%c0, %c0_0, %c0_1] : memref<2x8x32xf32, #tpu.memory_space<vmem>>, vector<1x8x32xf32>
    %1 = vector.shape_cast %0 : vector<1x8x32xf32> to vector<8x32xf32>
    %c0_2 = arith.constant 0 : index
    %c0_3 = arith.constant 0 : index
    %c0_4 = arith.constant 0 : index
    %2 = vector.load %arg3[%c0_2, %c0_3, %c0_4] : memref<2x32x128xf32, #tpu.memory_space<vmem>>, vector<1x32x128xf32>
    %3 = vector.shape_cast %2 : vector<1x32x128xf32> to vector<32x128xf32>
    %cst = arith.constant dense<0.000000e+00> : vector<8x128xf32>
    %4 = tpu.matmul %1, %3, %cst {dimension_numbers = #tpu.dot_dimension_numbers<[1], [0], [0], [1], [0, 0, 1, 1], [], []>} : vector<8x32xf32>, vector<32x128xf32>, vector<8x128xf32> -> vector<8x128xf32>
    %c0_5 = arith.constant 0 : index
    %c0_6 = arith.constant 0 : index
    %c0_7 = arith.constant 0 : index
    %5 = vector.load %arg4[%c0_5, %c0_6, %c0_7] : memref<2x1x128xf32, #tpu.memory_space<vmem>>, vector<1x1x128xf32>
    %6 = vector.shape_cast %5 : vector<1x1x128xf32> to vector<1x128xf32>
    %7 = vector.broadcast %6 : vector<1x128xf32> to vector<8x128xf32>
    %8 = arith.addf %4, %7 : vector<8x128xf32>
    %c1 = arith.constant 1 : index
    %c0_8 = arith.constant 0 : index
    %c0_9 = arith.constant 0 : index
    %9 = vector.load %arg2[%c1, %c0_8, %c0_9] : memref<2x8x32xf32, #tpu.memory_space<vmem>>, vector<1x8x32xf32>
    %10 = vector.shape_cast %9 : vector<1x8x32xf32> to vector<8x32xf32>
    %c1_10 = arith.constant 1 : index
    %c0_11 = arith.constant 0 : index
    %c0_12 = arith.constant 0 : index
    %11 = vector.load %arg3[%c1_10, %c0_11, %c0_12] : memref<2x32x128xf32, #tpu.memory_space<vmem>>, vector<1x32x128xf32>
    %12 = vector.shape_cast %11 : vector<1x32x128xf32> to vector<32x128xf32>
    %cst_13 = arith.constant dense<0.000000e+00> : vector<8x128xf32>
    %13 = tpu.matmul %10, %12, %cst_13 {dimension_numbers = #tpu.dot_dimension_numbers<[1], [0], [0], [1], [0, 0, 1, 1], [], []>} : vector<8x32xf32>, vector<32x128xf32>, vector<8x128xf32> -> vector<8x128xf32>
    %c1_14 = arith.constant 1 : index
    %c0_15 = arith.constant 0 : index
    %c0_16 = arith.constant 0 : index
    %14 = vector.load %arg4[%c1_14, %c0_15, %c0_16] : memref<2x1x128xf32, #tpu.memory_space<vmem>>, vector<1x1x128xf32>
    %15 = vector.shape_cast %14 : vector<1x1x128xf32> to vector<1x128xf32>
    %16 = vector.broadcast %15 : vector<1x128xf32> to vector<8x128xf32>
    %17 = arith.addf %13, %16 : vector<8x128xf32>
    %c0_17 = arith.constant 0 : index
    %c0_18 = arith.constant 0 : index
    %c0_19 = arith.constant 0 : index
    %18 = vector.load %arg5[%c0_17, %c0_18, %c0_19] : memref<2x8x128xf32, #tpu.memory_space<vmem>>, vector<1x8x128xf32>
    %19 = vector.shape_cast %18 : vector<1x8x128xf32> to vector<8x128xf32>
    %20 = vector.shape_cast %8 : vector<8x128xf32> to vector<1x8x128xf32>
    tpu.vector_store %arg5[%c0_17, %c0_18, %c0_19], %20 {strides = array<i32>} : memref<2x8x128xf32, #tpu.memory_space<vmem>>, vector<1x8x128xf32>,
    %c1_20 = arith.constant 1 : index
    %c0_21 = arith.constant 0 : index
    %c0_22 = arith.constant 0 : index
    %21 = vector.load %arg5[%c1_20, %c0_21, %c0_22] : memref<2x8x128xf32, #tpu.memory_space<vmem>>, vector<1x8x128xf32>
    %22 = vector.shape_cast %21 : vector<1x8x128xf32> to vector<8x128xf32>
    %23 = vector.shape_cast %17 : vector<8x128xf32> to vector<1x8x128xf32>
    tpu.vector_store %arg5[%c1_20, %c0_21, %c0_22], %23 {strides = array<i32>} : memref<2x8x128xf32, #tpu.memory_space<vmem>>, vector<1x8x128xf32>,
    return
  }
  func.func @transform_0(%arg0: i32, %arg1: i32) -> (i32, i32, i32) {
    %c0_i32 = arith.constant 0 : i32
    %c0_i32_0 = arith.constant 0 : i32
    %c0_i32_1 = arith.constant 0 : i32
    return %c0_i32, %arg1, %c0_i32_0 : i32, i32, i32
  }
  func.func @transform_1(%arg0: i32, %arg1: i32) -> (i32, i32, i32) {
    %c0_i32 = arith.constant 0 : i32
    %c0_i32_0 = arith.constant 0 : i32
    %c0_i32_1 = arith.constant 0 : i32
    return %c0_i32, %c0_i32_0, %arg0 : i32, i32, i32
  }
  func.func @transform_2(%arg0: i32, %arg1: i32) -> (i32, i32, i32) {
    %c0_i32 = arith.constant 0 : i32
    %c0_i32_0 = arith.constant 0 : i32
    %c0_i32_1 = arith.constant 0 : i32
    return %c0_i32, %c0_i32_0, %arg0 : i32, i32, i32
  }
  func.func @transform_3(%arg0: i32, %arg1: i32) -> (i32, i32, i32) {
    %c0_i32 = arith.constant 0 : i32
    %c0_i32_0 = arith.constant 0 : i32
    return %c0_i32, %arg1, %arg0 : i32, i32, i32
  }
}

</mosaic_0001>

<llo_original>
// kernel: tpu_custom_call.1
$region0: #{tpu_custom_call.1}
  #allocation0 [shape = 'u32[]', space=smem, size = 0x4, offset = 0x4, fixed_abs, tag = 'smem constant byte address 0x4 - core index']
  #allocation1 [shape = 'u32[144,128]{1,0:T(1,128)}', space=vmem, size = 0x12000, scoped, tag = 'internal scratch']
  %s0 = inlined_call_operand.hbm [shape: f32[2,16,32], index: 0, kind: input, shape index: {}]
  %s1 = inlined_call_operand.hbm [shape: f32[2,32,128], index: 1, kind: input, shape index: {}]
  %s2 = inlined_call_operand.vmem [shape: f32[2,1,128], index: 2, kind: input, shape index: {}]
  %s3 = inlined_call_operand.hbm [shape: f32[2,16,128], index: 3, kind: output, shape index: {}]
  %s4 = sld [smem:[#allocation0]]
  $region53: #{tpu_custom_call.1} parent=0
    _
  %s6 = ssub.s32 1, %s4
  %s7 = scalar_select 0, %s6, %s4
  $region1: #{tpu_custom_call.1} parent=0
    #allocation2 [shape = 'u8[16384]{0}', space=vmem, size = 0x4000, scoped, tag = 'input window, operand 0']
    #allocation3 [shape = 's32[2]{0}', space=sflag, size = 0x8, scoped, tag = 'scoped memory for tpu_custom_call.1']
    #allocation4 [shape = 's32[2]{0}', space=sflag, size = 0x8, scoped, tag = 'scoped memory for tpu_custom_call.1']
    #allocation5 [shape = 'u8[32768]{0}', space=vmem, size = 0x8000, scoped, tag = 'input window, operand 1, single buffered']
    #allocation6 [shape = 's32[1]{0}', space=sflag, size = 0x4, scoped, tag = 'scoped memory for tpu_custom_call.1']
    #allocation7 [shape = 'u8[16384]{0}', space=vmem, size = 0x4000, scoped, tag = 'output window, operand 0']
    %8 = vsyncpa [#allocation3], 0
    %s9 = scalar_lea.sflag [#allocation3], 1
    %10 = vsyncpa %s9, 0
    %11 = vsyncpa [#allocation6], 0
    %12 = vsyncpa [#allocation4], 0
    %s13 = scalar_lea.sflag [#allocation4], 1
    %14 = vsyncpa %s13, 0
    loop: start=0, step=1, limit=4
    $region2: #{tpu_custom_call.1} parent=1 // loop_pre_header
      _
    $region3: #{tpu_custom_call.1} parent=1 // loop_header
      %s16 = sphi 0, %s20
      %p17 = scmp.ge.s32.totalorder %s16, 4
      %s23 = sphi 0, %s35
      %s24 = sphi 0, %s31
      %s25 = sphi 0, %s23
      %s26 = sphi 0, %s24
      %s27 = sphi 0, %s25
      %s28 = sphi 0, %s26
      %s38 = sphi 0, %s40
      %s41 = sphi 0, %s38
      %s42 = sphi 0, %s41
      %s58 = sphi 0, %s42
      %s64 = sphi 0, %s66
      %s67 = sphi 0, %s64
      %s68 = sphi 0, %s67
      %s84 = sphi 0, %s68
      %s90 = sphi 0, %s92
      %s93 = sphi 0, %s90
      %s94 = sphi 0, %s93
      %s110 = sphi 0, %s94
      %s118 = sphi 0, %s120
      %s121 = sphi 0, %s118
      %s122 = sphi 0, %s121
      %s138 = sphi 0, %s122
    $region4: #{tpu_custom_call.1} parent=1 // loop_header_branch
      %19 = sbr.rel (%p17) target = $region8
    $region5: #{tpu_custom_call.1} parent=1 // loop_body
      %s21 = ssub.s32 %s16, 1
      %s22 = ssub.s32 %s16, 2
      %s29 = sadd.s32 1, %s24
      %p30 = scmp.ge.s32.totalorder %s29, 2
      %s31 = scalar_select %p30, 0, %s29
      %s32 = sadd.s32 1, %s23
      %s33 = scalar_select %p30, %s32, %s23
      %p34 = scmp.ge.s32.totalorder %s33, 1
      %s35 = scalar_select %p34, 0, %s33
      %s36 = ssub.s32 %s24, %s31
      %p37 = scmp.eq.s32.totalorder %s36, 0
      %s39 = sadd.s32 %s38, 1
      %s40 = scalar_select %p37, %s38, %s39
      %p43 = pneg %p37
      %p44 = scmp.eq.s32.totalorder %s16, 1
      %p45 = por %p43, %p44
      %p46 = scmp.ne.s32.totalorder %s38, %s41
      %p47 = scmp.eq.s32.totalorder %s16, 0
      %p48 = por %p46, %p47
      %p49 = scmp.ne.s32.totalorder %s38, %s41
      %p50 = scmp.eq.s32.totalorder %s21, 1
      %p51 = por %p49, %p50
      %p52 = scmp.ne.s32.totalorder %s41, %s42
      %p53 = scmp.eq.s32.totalorder %s21, 0
      %p54 = por %p52, %p53
      %p55 = scmp.ne.s32.totalorder %s41, %s42
      %p56 = scmp.eq.s32.totalorder %s22, 1
      %p57 = por %p55, %p56
      %p59 = scmp.ne.s32.totalorder %s42, %s58
      %p60 = scmp.eq.s32.totalorder %s22, 0
      %p61 = por %p59, %p60
      %s62 = ssub.s32 %s23, %s35
      %p63 = scmp.eq.s32.totalorder %s62, 0
      %s65 = sadd.s32 %s64, 1
      %s66 = scalar_select %p63, %s64, %s65
      %p69 = pneg %p63
      %p70 = scmp.eq.s32.totalorder %s16, 1
      %p71 = por %p69, %p70
      %p72 = scmp.ne.s32.totalorder %s64, %s67
      %p73 = scmp.eq.s32.totalorder %s16, 0
      %p74 = por %p72, %p73
      %p75 = scmp.ne.s32.totalorder %s64, %s67
      %p76 = scmp.eq.s32.totalorder %s21, 1
      %p77 = por %p75, %p76
      %p78 = scmp.ne.s32.totalorder %s67, %s68
      %p79 = scmp.eq.s32.totalorder %s21, 0
      %p80 = por %p78, %p79
      %p81 = scmp.ne.s32.totalorder %s67, %s68
      %p82 = scmp.eq.s32.totalorder %s22, 1
      %p83 = por %p81, %p82
      %p85 = scmp.ne.s32.totalorder %s68, %s84
      %p86 = scmp.eq.s32.totalorder %s22, 0
      %p87 = por %p85, %p86
      %s88 = ssub.s32 %s23, %s35
      %p89 = scmp.eq.s32.totalorder %s88, 0
      %s91 = sadd.s32 %s90, 1
      %s92 = scalar_select %p89, %s90, %s91
      %p95 = pneg %p89
      %p96 = scmp.eq.s32.totalorder %s16, 1
      %p97 = por %p95, %p96
      %p98 = scmp.ne.s32.totalorder %s90, %s93
      %p99 = scmp.eq.s32.totalorder %s16, 0
      %p100 = por %p98, %p99
      %p101 = scmp.ne.s32.totalorder %s90, %s93
      %p102 = scmp.eq.s32.totalorder %s21, 1
      %p103 = por %p101, %p102
      %p104 = scmp.ne.s32.totalorder %s93, %s94
      %p105 = scmp.eq.s32.totalorder %s21, 0
      %p106 = por %p104, %p105
      %p107 = scmp.ne.s32.totalorder %s93, %s94
      %p108 = scmp.eq.s32.totalorder %s22, 1
      %p109 = por %p107, %p108
      %p111 = scmp.ne.s32.totalorder %s94, %s110
      %p112 = scmp.eq.s32.totalorder %s22, 0
      %p113 = por %p111, %p112
      %s114 = ssub.s32 %s24, %s31
      %s115 = ssub.s32 %s23, %s35
      %s116 = sor.u32 %s114, %s115
      %p117 = scmp.eq.s32.totalorder %s116, 0
      %s119 = sadd.s32 %s118, 1
      %s120 = scalar_select %p117, %s118, %s119
      %p123 = pneg %p117
      %p124 = scmp.eq.s32.totalorder %s16, 1
      %p125 = por %p123, %p124
      %p126 = scmp.ne.s32.totalorder %s118, %s121
      %p127 = scmp.eq.s32.totalorder %s16, 0
      %p128 = por %p126, %p127
      %p129 = scmp.ne.s32.totalorder %s118, %s121
      %p130 = scmp.eq.s32.totalorder %s21, 1
      %p131 = por %p129, %p130
      %p132 = scmp.ne.s32.totalorder %s121, %s122
      %p133 = scmp.eq.s32.totalorder %s21, 0
      %p134 = por %p132, %p133
      %p135 = scmp.ne.s32.totalorder %s121, %s122
      %p136 = scmp.eq.s32.totalorder %s22, 1
      %p137 = por %p135, %p136
      %p139 = scmp.ne.s32.totalorder %s122, %s138
      %p140 = scmp.eq.s32.totalorder %s22, 0
      %p141 = por %p139, %p140
      %p142 = scmp.le.s32.totalorder 1, %s16
      %p143 = scmp.lt.s32.totalorder %s16, 3
      %p144 = pnand %p142, %p143
      %p145 = pneg %p144
      // Predicated region
      $region9: #{tpu_custom_call.1} parent=5 // pred_check
        _
      $region10: #{tpu_custom_call.1} parent=5 // pred_check_branch
        %147 = sbr.rel (%p144) target = $region12
      $region11: #{tpu_custom_call.1} parent=5 // pred_region
        %s148 = ssub.s32 %s16, 1
        // Predicated region
        $region13: #{tpu_custom_call.1} parent=11 // pred_check
          %p149 = pneg %p80
        $region14: #{tpu_custom_call.1} parent=11 // pred_check_branch
          %151 = sbr.rel (%p149) target = $region16
        $region15: #{tpu_custom_call.1} parent=11 // pred_region
          %s153 = ssub.s32 1024, 1024
          %154 = vsyncadd [#allocation6], %s153
          %s155 = smul.addr %s25, 128
          %s156 = scalar_lea.hbm %s1, %s155
          %s157 = sshll.u32 [#allocation5], 4
          %s158 = int_to_ptr.vmem [resolvable:$true] %s157
          %163 = dma.hbm_to_vmem [thread:$0]  %s156, 1024, %s158, [#allocation6], 128, 128, 8
        $region16: #{tpu_custom_call.1} parent=11 // pred_fallthru
          _
        // Predicated region
        $region17: #{tpu_custom_call.1} parent=11 // pred_check
          %p164 = pneg %p106
        $region18: #{tpu_custom_call.1} parent=11 // pred_check_branch
          %166 = sbr.rel (%p164) target = $region20
        $region19: #{tpu_custom_call.1} parent=11 // pred_region
          %p167 = scmp.lt.s32.totalorder %s25, 0
          %s168 = scalar_select %p167, %s25, 0
          %s169 = scalar_lea.vmem %s2, %s168
        $region20: #{tpu_custom_call.1} parent=11 // pred_fallthru
          _
      $region12: #{tpu_custom_call.1} parent=5 // pred_fallthru
        _
      %p170 = scmp.lt.s32.totalorder %s16, 2
      // Predicated region
      $region21: #{tpu_custom_call.1} parent=5 // pred_check
        %p171 = pneg %p170
      $region22: #{tpu_custom_call.1} parent=5 // pred_check_branch
        %173 = sbr.rel (%p171) target = $region24
      $region23: #{tpu_custom_call.1} parent=5 // pred_region
        // Predicated region
        $region25: #{tpu_custom_call.1} parent=23 // pred_check
          %p174 = pneg %p48
        $region26: #{tpu_custom_call.1} parent=23 // pred_check_branch
          %176 = sbr.rel (%p174) target = $region28
        $region27: #{tpu_custom_call.1} parent=23 // pred_region
          %s177 = sand.u32 %s38, 1
          %s178 = scalar_lea.sflag [#allocation3], %s177
          %s179 = sand.u32 %s38, 1
          %s180 = smul.addr %s179, 16
          %s181 = scalar_lea.vmem [#allocation2], %s180
          %s183 = ssub.s32 256, 256
          %184 = vsyncadd %s178, %s183
          %s185 = smul.addr %s24, 128
          %s186 = scalar_lea.hbm %s0, %s185
          %s187 = sshll.u32 %s181, 4
          %s188 = int_to_ptr.vmem [resolvable:$true] %s187
          %193 = dma.hbm_to_vmem [thread:$0]  %s186, 256, %s188, %s178, 256, 128, 8
        $region28: #{tpu_custom_call.1} parent=23 // pred_fallthru
          _
      $region24: #{tpu_custom_call.1} parent=5 // pred_fallthru
        _
      %p194 = scmp.le.s32.totalorder 1, %s16
      %p195 = scmp.lt.s32.totalorder %s16, 3
      %p196 = pnand %p194, %p195
      %p197 = pneg %p196
      // Predicated region
      $region29: #{tpu_custom_call.1} parent=5 // pred_check
        _
      $region30: #{tpu_custom_call.1} parent=5 // pred_check_branch
        %199 = sbr.rel (%p196) target = $region32
      $region31: #{tpu_custom_call.1} parent=5 // pred_region
        %s200 = ssub.s32 %s16, 1
        %s201 = sand.u32 %s41, 1
        %s202 = scalar_lea.sflag [#allocation3], %s201
        %s203 = sand.u32 %s41, 1
        %s204 = smul.addr %s203, 16
        %s205 = scalar_lea.vmem [#allocation2], %s204
        // Predicated region
        $region33: #{tpu_custom_call.1} parent=31 // pred_check
          %p206 = pneg %p54
        $region34: #{tpu_custom_call.1} parent=31 // pred_check_branch
          %208 = sbr.rel (%p206) target = $region36
        $region35: #{tpu_custom_call.1} parent=31 // pred_region
          %209 = dma.done %s202, 256
        $region36: #{tpu_custom_call.1} parent=31 // pred_fallthru
          _
        // Predicated region
        $region37: #{tpu_custom_call.1} parent=31 // pred_check
          %p210 = pneg %p80
        $region38: #{tpu_custom_call.1} parent=31 // pred_check_branch
          %212 = sbr.rel (%p210) target = $region40
        $region39: #{tpu_custom_call.1} parent=31 // pred_region
          %213 = dma.done [#allocation6], 1024
        $region40: #{tpu_custom_call.1} parent=31 // pred_fallthru
          _
        %s214 = sand.u32 %s41, 1
        %s215 = scalar_lea.sflag [#allocation3], %s214
        %s216 = sand.u32 %s41, 1
        %s217 = smul.addr %s216, 16
        %s218 = scalar_lea.vmem [#allocation2], %s217
        %p219 = pneg %p54
        %p220 = pneg %p51
        %p221 = pneg %p80
        %p222 = pneg %p77
        %p223 = scmp.lt.s32.totalorder %s25, 0
        %s224 = scalar_select %p223, %s25, 0
        %s225 = scalar_lea.vmem %s2, %s224
        %p226 = pneg %p106
        %p227 = pneg %p103
        %p228 = pneg %p134
        %p229 = pneg %p131
        %s230 = sand.u32 %s121, 1
        %s231 = scalar_lea.sflag [#allocation4], %s230
        %s232 = sand.u32 %s121, 1
        %s233 = smul.addr %s232, 16
        %s234 = scalar_lea.vmem [#allocation7], %s233
        %p235 = scmp.lt.s32.totalorder %s25, 0
        %s236 = scalar_select %p235, %s25, 0
        %s237 = scalar_lea.vmem %s2, %s236
        %v238 = vld [vmem:[%s205] sm:$0xff]
        %v239 = vld [vmem:[#allocation5] sm:$0xff]
        %v240 = vld [vmem:[#allocation5 + $0x8] sm:$0xff]
        %v241 = vld [vmem:[#allocation5 + $0x10] sm:$0xff]
        %v242 = vld [vmem:[#allocation5 + $0x18] sm:$0xff]
        %v243 = vld [vmem:[%s237] sm:$0x1]
        %v245 = vlaneseq
        %v246 = vshrl.u32 %v245, 7
        %v247 = vsub.s32 0, %v246
        %v248 = vrot.slane %v243, %v247
        %vm250 = vcmask 261120
        %v252 = vsel %vm250, %v238, 0
        %254 = vmatprep.subr.mxu0 0.0
        %255 = vmatpush1.msra.mxu0 %v239
        %256 = vmatprep.subr.mxu0 0.0
        %257 = vmatpush1.msra.mxu0 %v240
        %258 = vmatprep.subr.mxu0 0.0
        %259 = vmatpush1.msra.mxu0 %v241
        %260 = vmatprep.subr.mxu0 0.0
        %261 = vmatpush1.msra.mxu0 %v242
        %262 = vmatprep.subr.mxu0 0.0
        %263 = vmatpush1.msra.mxu0 0.0
        %264 = vmatprep.subr.mxu0 0.0
        %265 = vmatpush1.msra.mxu0 0.0
        %266 = vmatprep.subr.mxu0 0.0
        %267 = vmatpush1.msra.mxu0 0.0
        %268 = vmatprep.subr.mxu0 0.0
        %269 = vmatpush1.msra.mxu0 0.0
        %270 = vmatprep.subr.mxu0 0.0
        %271 = vmatpush1.msra.mxu0 0.0
        %272 = vmatprep.subr.mxu0 0.0
        %273 = vmatpush1.msra.mxu0 0.0
        %274 = vmatprep.subr.mxu0 0.0
        %275 = vmatpush1.msra.mxu0 0.0
        %276 = vmatprep.subr.mxu0 0.0
        %277 = vmatpush1.msra.mxu0 0.0
        %278 = vmatprep.subr.mxu0 0.0
        %279 = vmatpush1.msra.mxu0 0.0
        %280 = vmatprep.subr.mxu0 0.0
        %281 = vmatpush1.msra.mxu0 0.0
        %282 = vmatprep.subr.mxu0 0.0
        %283 = vmatpush1.msra.mxu0 0.0
        %284 = vmatprep.subr.mxu0 0.0
        %285 = vmatpush1.msra.mxu0 0.0
        %286 = vmatprep.subr.mxu0 0.0
        %287 = vmatpush1.msra.mxu0 0.0
        %288 = vmatprep.subr.mxu0 0.0
        %289 = vmatpush1.msra.mxu0 0.0
        %290 = vmatprep.subr.mxu0 0.0
        %291 = vmatpush1.msra.mxu0 0.0
        %292 = vmatprep.subr.mxu0 0.0
        %293 = vmatpush1.msra.mxu0 0.0
        %294 = vmatprep.subr.mxu0 0.0
        %295 = vmatpush1.msra.mxu0 0.0
        %296 = vmatprep.subr.mxu0 0.0
        %297 = vmatpush1.msra.mxu0 0.0
        %298 = vmatprep.subr.mxu0 0.0
        %299 = vmatpush1.msra.mxu0 0.0
        %300 = vmatprep.subr.mxu0 0.0
        %301 = vmatpush1.msra.mxu0 0.0
        %302 = vmatprep.subr.mxu0 0.0
        %303 = vmatpush1.msra.mxu0 0.0
        %304 = vmatprep.subr.mxu0 0.0
        %305 = vmatpush1.msra.mxu0 0.0
        %306 = vmatprep.subr.mxu0 0.0
        %307 = vmatpush1.msra.mxu0 0.0
        %308 = vmatprep.subr.mxu0 0.0
        %309 = vmatpush1.msra.mxu0 0.0
        %310 = vmatprep.subr.mxu0 0.0
        %311 = vmatpush1.msra.mxu0 0.0
        %312 = vmatprep.subr.mxu0 0.0
        %313 = vmatpush1.msra.mxu0 0.0
        %314 = vmatprep.subr.mxu0 0.0
        %315 = vmatpush1.msra.mxu0 0.0
        %316 = vmatprep.subr.mxu0 0.0
        %317 = vmatpush1.msra.mxu0 0.0
        %318 = vmatprep.mubr.f32.mxu0 0.0
        %319 = vmatmul.mubr.f32.gmra.mrb[0].mxu0 %v252
        %v320 = vpop.f32.mrb[0].mxu0
        %v321 = vadd.f32 %v248, %v320
        %v322 = vpop.f32.mrb[0].mxu0
        %323 = vdwg.mxu0
        %s324 = scalar_lea.vmem %s205, 8 [#allocation2]
        %v325 = vld [vmem:[%s324] sm:$0xff]
        %s326 = scalar_lea.vmem [#allocation5], 32
        %v327 = vld [vmem:[%s326] sm:$0xff]
        %v328 = vld [vmem:[%s326 + $0x8] sm:$0xff]
        %v329 = vld [vmem:[%s326 + $0x10] sm:$0xff]
        %v330 = vld [vmem:[%s326 + $0x18] sm:$0xff]
        %s331 = scalar_lea.vmem %s237, 1
        %v332 = vld [vmem:[%s331] sm:$0x1]
        %v334 = vlaneseq
        %v335 = vshrl.u32 %v334, 7
        %v336 = vsub.s32 0, %v335
        %v337 = vrot.slane %v332, %v336
        %v340 = vsel %vm250, %v325, 0
        %342 = vmatprep.subr.mxu0 0.0
        %343 = vmatpush1.msra.mxu0 %v327
        %344 = vmatprep.subr.mxu0 0.0
        %345 = vmatpush1.msra.mxu0 %v328
        %346 = vmatprep.subr.mxu0 0.0
        %347 = vmatpush1.msra.mxu0 %v329
        %348 = vmatprep.subr.mxu0 0.0
        %349 = vmatpush1.msra.mxu0 %v330
        %350 = vmatprep.subr.mxu0 0.0
        %351 = vmatpush1.msra.mxu0 0.0
        %352 = vmatprep.subr.mxu0 0.0
        %353 = vmatpush1.msra.mxu0 0.0
        %354 = vmatprep.subr.mxu0 0.0
        %355 = vmatpush1.msra.mxu0 0.0
        %356 = vmatprep.subr.mxu0 0.0
        %357 = vmatpush1.msra.mxu0 0.0
        %358 = vmatprep.subr.mxu0 0.0
        %359 = vmatpush1.msra.mxu0 0.0
        %360 = vmatprep.subr.mxu0 0.0
        %361 = vmatpush1.msra.mxu0 0.0
        %362 = vmatprep.subr.mxu0 0.0
        %363 = vmatpush1.msra.mxu0 0.0
        %364 = vmatprep.subr.mxu0 0.0
        %365 = vmatpush1.msra.mxu0 0.0
        %366 = vmatprep.subr.mxu0 0.0
        %367 = vmatpush1.msra.mxu0 0.0
        %368 = vmatprep.subr.mxu0 0.0
        %369 = vmatpush1.msra.mxu0 0.0
        %370 = vmatprep.subr.mxu0 0.0
        %371 = vmatpush1.msra.mxu0 0.0
        %372 = vmatprep.subr.mxu0 0.0
        %373 = vmatpush1.msra.mxu0 0.0
        %374 = vmatprep.subr.mxu0 0.0
        %375 = vmatpush1.msra.mxu0 0.0
        %376 = vmatprep.subr.mxu0 0.0
        %377 = vmatpush1.msra.mxu0 0.0
        %378 = vmatprep.subr.mxu0 0.0
        %379 = vmatpush1.msra.mxu0 0.0
        %380 = vmatprep.subr.mxu0 0.0
        %381 = vmatpush1.msra.mxu0 0.0
        %382 = vmatprep.subr.mxu0 0.0
        %383 = vmatpush1.msra.mxu0 0.0
        %384 = vmatprep.subr.mxu0 0.0
        %385 = vmatpush1.msra.mxu0 0.0
        %386 = vmatprep.subr.mxu0 0.0
        %387 = vmatpush1.msra.mxu0 0.0
        %388 = vmatprep.subr.mxu0 0.0
        %389 = vmatpush1.msra.mxu0 0.0
        %390 = vmatprep.subr.mxu0 0.0
        %391 = vmatpush1.msra.mxu0 0.0
        %392 = vmatprep.subr.mxu0 0.0
        %393 = vmatpush1.msra.mxu0 0.0
        %394 = vmatprep.subr.mxu0 0.0
        %395 = vmatpush1.msra.mxu0 0.0
        %396 = vmatprep.subr.mxu0 0.0
        %397 = vmatpush1.msra.mxu0 0.0
        %398 = vmatprep.subr.mxu0 0.0
        %399 = vmatpush1.msra.mxu0 0.0
        %400 = vmatprep.subr.mxu0 0.0
        %401 = vmatpush1.msra.mxu0 0.0
        %402 = vmatprep.subr.mxu0 0.0
        %403 = vmatpush1.msra.mxu0 0.0
        %404 = vmatprep.subr.mxu0 0.0
        %405 = vmatpush1.msra.mxu0 0.0
        %406 = vmatprep.mubr.f32.mxu0 0.0
        %407 = vmatmul.mubr.f32.gmra.mrb[0].mxu0 %v340
        %v408 = vpop.f32.mrb[0].mxu0
        %v409 = vadd.f32 %v337, %v408
        %v410 = vpop.f32.mrb[0].mxu0
        %411 = vdwg.mxu0
        %412 = vst [vmem:[%s234] sm:$0xff] %v321
        %s413 = scalar_lea.vmem %s234, 8 [#allocation7]
        %414 = vst [vmem:[%s413] sm:$0xff] %v409
        %s415 = sand.u32 %s121, 1
        %s416 = scalar_lea.sflag [#allocation4], %s415
        %s417 = sand.u32 %s121, 1
        %s418 = smul.addr %s417, 16
        %s419 = scalar_lea.vmem [#allocation7], %s418
        // Predicated region
        $region41: #{tpu_custom_call.1} parent=31 // pred_check
          %p420 = pneg %p131
        $region42: #{tpu_custom_call.1} parent=31 // pred_check_branch
          %422 = sbr.rel (%p420) target = $region44
        $region43: #{tpu_custom_call.1} parent=31 // pred_region
          %s424 = ssub.s32 256, 256
          %425 = vsyncadd %s416, %s424
          %s426 = sadd.s32 %s25, %s26
          %s427 = smul.addr %s426, 128
          %s428 = scalar_lea.hbm %s3, %s427
          %s429 = sshll.u32 %s419, 4
          %s430 = int_to_ptr.vmem [resolvable:$true] %s429
          %435 = dma.vmem_to_hbm [thread:$0]  %s430, 256, %s428, %s416, 128, 256, 8
        $region44: #{tpu_custom_call.1} parent=31 // pred_fallthru
          _
      $region32: #{tpu_custom_call.1} parent=5 // pred_fallthru
        _
      %p436 = scmp.le.s32.totalorder 2, %s16
      // Predicated region
      $region45: #{tpu_custom_call.1} parent=5 // pred_check
        %p437 = pneg %p436
      $region46: #{tpu_custom_call.1} parent=5 // pred_check_branch
        %439 = sbr.rel (%p437) target = $region48
      $region47: #{tpu_custom_call.1} parent=5 // pred_region
        %s440 = ssub.s32 %s16, 2
        // Predicated region
        $region49: #{tpu_custom_call.1} parent=47 // pred_check
          %p441 = pneg %p137
        $region50: #{tpu_custom_call.1} parent=47 // pred_check_branch
          %443 = sbr.rel (%p441) target = $region52
        $region51: #{tpu_custom_call.1} parent=47 // pred_region
          %s444 = sand.u32 %s122, 1
          %s445 = scalar_lea.sflag [#allocation4], %s444
          %s446 = sand.u32 %s122, 1
          %s447 = smul.addr %s446, 16
          %s448 = scalar_lea.vmem [#allocation7], %s447
          %449 = dma.done %s445, 256
        $region52: #{tpu_custom_call.1} parent=47 // pred_fallthru
          _
      $region48: #{tpu_custom_call.1} parent=5 // pred_fallthru
        _
    $region6: #{tpu_custom_call.1} parent=1 // loop_footer
      %s20 = sadd.s32 1, %s16
    $region7: #{tpu_custom_call.1} parent=1 // loop_footer_branch
      %15 = sbr.rel target = $region3
    $region8: #{tpu_custom_call.1} parent=1 // loop_exit
      _
    %450 = vsyncpa [#allocation3], 1
    %s451 = scalar_lea.sflag [#allocation3], 1
    %452 = vsyncpa %s451, 1
    %453 = vsyncpa [#allocation6], 1
    %454 = vsyncpa [#allocation4], 1
    %s455 = scalar_lea.sflag [#allocation4], 1
    %456 = vsyncpa %s455, 1

</llo_original>
